<compile_context>
chip_gen: v5e
topology: v5e:2x2
jax: 0.10.0
libtpu: 0.0.40
codegen_flags: <defaults>
</compile_context>

<pallas_src>
import functools

import jax
import jax.numpy as jnp
import numpy as np
from jax.experimental import pallas as pl
from jax.experimental.pallas import tpu as pltpu


def _interp_matrix(out_size: int, in_size: int) -> np.ndarray:
    """Row-interpolation matrix for bilinear resize with align_corners=True."""
    a = np.zeros((out_size, in_size), dtype=np.float32)
    if out_size == 1:
        a[0, 0] = 1.0
        return a
    scale = (in_size - 1) / (out_size - 1)
    for i in range(out_size):
        src = i * scale
        i0 = min(int(np.floor(src)), in_size - 1)
        i1 = min(i0 + 1, in_size - 1)
        w1 = np.float32(src - i0)
        w0 = np.float32(1.0 - w1)
        a[i, i0] += w0
        a[i, i1] += w1
    return a


def _silog_block_kernel(*refs, inv_n_block, resize):
    """One grid step = BB images. Emits per-block partial statistics."""
    if resize:
        x_ref, t_ref, ah_ref, awbd_ref, sum_ref, m2_ref, max_ref = refs
    else:
        x_ref, t_ref, sum_ref, m2_ref, max_ref = refs

    t = t_ref[...]                                   # (H_out, BB*W_out)

    if resize:
        x = x_ref[...]                               # (H_in, BB*W_in)
        # Bilinear resize (align_corners=True) as two lane-dense MXU matmuls.
        z = jnp.dot(ah_ref[...], x,
                    preferred_element_type=jnp.float32)      # (H_out, BB*W_in)
        xi = jnp.dot(z, awbd_ref[...],
                     preferred_element_type=jnp.float32)     # (H_out, BB*W_out)
    else:
        xi = x_ref[...]                              # already (H_out, BB*W_out)

    # safe_log(x) - safe_log(t) fused into a single log (one EUP op / element).
    g = jnp.log(jnp.maximum(xi, 1e-6) / jnp.maximum(t, 1e-6))

    # Per-block two-pass statistics (numerically stable partials).
    s = jnp.sum(g)
    mean_blk = s * inv_n_block
    d = g - mean_blk
    m2 = jnp.sum(d * d)
    mx = jnp.max(t)

    sum_ref[...] = jnp.full(sum_ref.shape, s, dtype=jnp.float32)
    m2_ref[...] = jnp.full(m2_ref.shape, m2, dtype=jnp.float32)
    max_ref[...] = jnp.full(max_ref.shape, mx, dtype=jnp.float32)


def _choose_block_images(b, h_in, w_in, h_out, w_out, resize,
                         max_block_bytes=4 * 1024 * 1024):
    """Largest BB (images per grid step) that keeps blocks lane-legal & small."""
    def lanes_ok(bb):
        if bb == b:                      # full-array blocks are always legal
            return True
        return (bb * w_in) % 128 == 0 and (bb * w_out) % 128 == 0

    def footprint(bb):
        per_step = 4 * bb * (h_in * w_in + h_out * w_out)     # x + t, one buffer
        resident = 4 * (bb * w_in) * (bb * w_out) if resize else 0
        return 2 * per_step + resident                        # double-buffered

    feas = [bb for bb in range(1, b + 1)
            if b % bb == 0 and lanes_ok(bb) and footprint(bb) <= max_block_bytes]
    if not feas:
        return b
    multi = [bb for bb in feas if b // bb >= 2]   # prefer >=2 blocks (megacore)
    return max(multi) if multi else max(feas)


def silog_loss(input_nchw, target_nchw, interpolate=True, block_images=None):
    """SILogLoss forward.  input/target are NCHW float tensors."""
    n, c, h_in, w_in = input_nchw.shape
    nt, ct, h_out, w_out = target_nchw.shape
    assert (n, c) == (nt, ct)
    b = n * c

    resize = bool(interpolate) and (h_in, w_in) != (h_out, w_out)
    if not resize:
        assert (h_in, w_in) == (h_out, w_out), \
            "interpolate=False requires matching spatial sizes"

    # Lane-dense (H, B*W) layout; column index = image*W + w (layout plumbing
    # outside the kernel).
    x = input_nchw.reshape(b, h_in, w_in).astype(jnp.float32)
    t = target_nchw.reshape(b, h_out, w_out).astype(jnp.float32)
    x2 = jnp.transpose(x, (1, 0, 2)).reshape(h_in, b * w_in)
    t2 = jnp.transpose(t, (1, 0, 2)).reshape(h_out, b * w_out)

    bb = (block_images if block_images is not None
          else _choose_block_images(b, h_in, w_in, h_out, w_out, resize))
    assert b % bb == 0, "block_images must divide N*C"
    nb = b // bb
    n_blk = bb * h_out * w_out

    in_specs = [
        pl.BlockSpec((h_in, bb * w_in), lambda i: (0, i)),
        pl.BlockSpec((h_out, bb * w_out), lambda i: (0, i)),
    ]
    inputs = [x2, t2]
    if resize:
        a_h = jnp.asarray(_interp_matrix(h_out, h_in))              # (H_out, H_in)
        aw_t = _interp_matrix(w_out, w_in).T                        # (W_in, W_out)
        aw_bd = jnp.asarray(np.kron(np.eye(bb, dtype=np.float32), aw_t))
        in_specs += [
            pl.BlockSpec((h_out, h_in), lambda i: (0, 0)),
            pl.BlockSpec((bb * w_in, bb * w_out), lambda i: (0, 0)),
        ]
        inputs += [a_h, aw_bd]

    # Scoped-VMEM budget: double-buffered input blocks + resident interp mats.
    per_step = 4 * bb * (h_in * w_in + h_out * w_out)
    resident = 4 * (h_out * h_in + (bb * w_in) * (bb * w_out)) if resize else 0
    need = 4 * per_step + resident + 3 * 2 * (8 * 128 * 4) + (2 << 20)
    vmem_limit = int(min(64 * 1024 * 1024, max(32 * 1024 * 1024, need)))

    out_sd = jax.ShapeDtypeStruct((nb, 8, 128), jnp.float32)
    out_spec = pl.BlockSpec((1, 8, 128), lambda i: (i, 0, 0))

    kernel = functools.partial(_silog_block_kernel,
                               inv_n_block=float(1.0 / n_blk),
                               resize=resize)

    sums, m2s, maxs = pl.pallas_call(
        kernel,
        out_shape=(out_sd, out_sd, out_sd),
        grid_spec=pltpu.PrefetchScalarGridSpec(
            num_scalar_prefetch=0,
            grid=(nb,),
            in_specs=in_specs,
            out_specs=[out_spec, out_spec, out_spec],
        ),
        compiler_params=pltpu.CompilerParams(
            dimension_semantics=("parallel",),   # independent blocks -> 2 TCs on v7x
            vmem_limit_bytes=vmem_limit,
        ),
    )(*inputs)

    # Tiny O(nb) combine (Chan parallel-variance merge) in plain JAX.
    s_b = sums[:, 0, 0]
    m2_b = m2s[:, 0, 0]
    mx_b = maxs[:, 0, 0]
    n_total = float(nb * n_blk)
    total = jnp.sum(s_b)
    mean = total / n_total
    mean_b = s_b / float(n_blk)
    m2 = jnp.sum(m2_b) + float(n_blk) * jnp.sum((mean_b - mean) ** 2)
    var = m2 / (n_total - 1.0)                      # torch.var default: unbiased
    dg = var + 0.15 * mean * mean
    loss = 10.0 * jnp.sqrt(jnp.maximum(dg, 0.0))
    # torch.all(target <= 0): both tensors overwritten with 1e-6 -> g == 0 -> 0.
    all_invalid = jnp.max(mx_b) <= 0.0
    return jnp.where(all_invalid, jnp.float32(0.0), loss)


def _silog_loss_ref(input_nchw, target_nchw):
    """Pure-JAX reference mirroring the PyTorch forward (for sanity check)."""
    n, c, h_in, w_in = input_nchw.shape
    _, _, h_out, w_out = target_nchw.shape
    a_h = jnp.asarray(_interp_matrix(h_out, h_in))
    a_w = jnp.asarray(_interp_matrix(w_out, w_in))
    x = input_nchw.reshape(n * c, h_in, w_in).astype(jnp.float32)
    t = target_nchw.reshape(n * c, h_out, w_out).astype(jnp.float32)
    xi = jnp.einsum('oh,bhw,pw->bop', a_h, x, a_w)
    all_invalid = jnp.all(t <= 0.0)
    t = jnp.where(all_invalid, 1e-6, t)
    xi = jnp.where(all_invalid, 1e-6, xi)
    g = jnp.log(jnp.maximum(xi, 1e-6)) - jnp.log(jnp.maximum(t, 1e-6))
    dg = jnp.var(g, ddof=1) + 0.15 * jnp.mean(g) ** 2
    return 10.0 * jnp.sqrt(dg)


if __name__ == "__main__":
    key = jax.random.PRNGKey(0)
    k1, k2, k3 = jax.random.split(key, 3)
    # Depth-style NCHW tensors; input at lower resolution than target.
    input_nchw = jax.random.uniform(k1, (4, 4, 8, 16), jnp.float32, 0.1, 10.0)
    target_nchw = jax.random.uniform(k2, (4, 4, 16, 32), jnp.float32, 0.1, 10.0)

    # 1) resize path (bilinear align_corners=True inside the kernel)
    loss = jax.block_until_ready(silog_loss(input_nchw, target_nchw))
    ref = _silog_loss_ref(input_nchw, target_nchw)
    assert jnp.allclose(loss, ref, rtol=5e-4, atol=1e-4), (loss, ref)

    # 2) all-invalid target path -> loss must be exactly 0
    loss0 = jax.block_until_ready(silog_loss(input_nchw, -target_nchw))
    assert jnp.allclose(loss0, 0.0), loss0

    # 3) no-resize path (equal sizes -> matmuls skipped)
    target_same = jax.random.uniform(k3, (4, 4, 8, 16), jnp.float32, 0.1, 10.0)
    loss_s = jax.block_until_ready(silog_loss(input_nchw, target_same))
    ref_s = _silog_loss_ref(input_nchw, target_same)
    assert jnp.allclose(loss_s, ref_s, rtol=5e-4, atol=1e-4), (loss_s, ref_s)

    print("KERNEL_OK")
</pallas_src>

<mosaic_0001>
module attributes {stable_mosaic.version = 11 : i64} {
  func.func @_silog_block_kernel(%arg0: i32, %arg1: memref<8x128xf32, #tpu.memory_space<vmem>>, %arg2: memref<16x256xf32, #tpu.memory_space<vmem>>, %arg3: memref<16x8xf32, #tpu.memory_space<vmem>>, %arg4: memref<128x256xf32, #tpu.memory_space<vmem>>, %arg5: memref<1x8x128xf32, #tpu.memory_space<vmem>>, %arg6: memref<1x8x128xf32, #tpu.memory_space<vmem>>, %arg7: memref<1x8x128xf32, #tpu.memory_space<vmem>>) attributes {dimension_semantics = [#tpu.dimension_semantics<parallel>], iteration_bounds = array<i64: 2>, scalar_prefetch = 0 : i64, scratch_operands = 0 : i64, tpu.core_type = #tpu.core_type<tc>, window_params = [{transform_indices = @transform_0, window_bounds = array<i64: 8, 128>}, {transform_indices = @transform_1, window_bounds = array<i64: 16, 256>}, {pipeline_mode = #tpu.pipeline_mode<synchronous>, transform_indices = @transform_2, window_bounds = array<i64: 16, 8>}, {pipeline_mode = #tpu.pipeline_mode<synchronous>, transform_indices = @transform_3, window_bounds = array<i64: 128, 256>}, {transform_indices = @transform_4, window_bounds = array<i64: 1, 8, 128>}, {transform_indices = @transform_5, window_bounds = array<i64: 1, 8, 128>}, {transform_indices = @transform_6, window_bounds = array<i64: 1, 8, 128>}]} {
    %c0 = arith.constant 0 : index
    %c0_0 = arith.constant 0 : index
    %0 = vector.load %arg2[%c0, %c0_0] : memref<16x256xf32, #tpu.memory_space<vmem>>, vector<16x256xf32>
    %c0_1 = arith.constant 0 : index
    %c0_2 = arith.constant 0 : index
    %1 = vector.load %arg1[%c0_1, %c0_2] : memref<8x128xf32, #tpu.memory_space<vmem>>, vector<8x128xf32>
    %c0_3 = arith.constant 0 : index
    %c0_4 = arith.constant 0 : index
    %2 = vector.load %arg3[%c0_3, %c0_4] : memref<16x8xf32, #tpu.memory_space<vmem>>, vector<16x8xf32>
    %cst = arith.constant dense<0.000000e+00> : vector<16x128xf32>
    %3 = tpu.matmul %2, %1, %cst {dimension_numbers = #tpu.dot_dimension_numbers<[1], [0], [0], [1], [0, 0, 1, 1], [], []>} : vector<16x8xf32>, vector<8x128xf32>, vector<16x128xf32> -> vector<16x128xf32>
    %c0_5 = arith.constant 0 : index
    %c0_6 = arith.constant 0 : index
    %4 = vector.load %arg4[%c0_5, %c0_6] : memref<128x256xf32, #tpu.memory_space<vmem>>, vector<128x256xf32>
    %cst_7 = arith.constant dense<0.000000e+00> : vector<16x256xf32>
    %5 = tpu.matmul %3, %4, %cst_7 {dimension_numbers = #tpu.dot_dimension_numbers<[1], [0], [0], [1], [0, 0, 1, 1], [], []>} : vector<16x128xf32>, vector<128x256xf32>, vector<16x256xf32> -> vector<16x256xf32>
    %cst_8 = arith.constant 9.99999997E-7 : f32
    %6 = vector.broadcast %cst_8 : f32 to vector<16x256xf32>
    %7 = arith.maximumf %5, %6 : vector<16x256xf32>
    %cst_9 = arith.constant 9.99999997E-7 : f32
    %8 = vector.broadcast %cst_9 : f32 to vector<16x256xf32>
    %9 = arith.maximumf %0, %8 : vector<16x256xf32>
    %10 = arith.divf %7, %9 : vector<16x256xf32>
    %11 = math.log %10 : vector<16x256xf32>
    %12 = vector.shape_cast %11 : vector<16x256xf32> to vector<1x16x256xf32>
    %cst_10 = arith.constant dense<0.000000e+00> : vector<1xf32>
    %13 = vector.multi_reduction <add>, %12, %cst_10 [1, 2] : vector<1x16x256xf32> to vector<1xf32>
    %14 = vector.shape_cast %13 : vector<1xf32> to vector<1x1x1xf32>
    %15 = vector.extract %14[0, 0, 0] : f32 from vector<1x1x1xf32>
    %cst_11 = arith.constant 2.44140625E-4 : f32
    %16 = arith.mulf %15, %cst_11 : f32
    %17 = vector.broadcast %16 : f32 to vector<16x256xf32>
    %18 = arith.subf %11, %17 : vector<16x256xf32>
    %19 = arith.mulf %18, %18 : vector<16x256xf32>
    %20 = vector.shape_cast %19 : vector<16x256xf32> to vector<1x16x256xf32>
    %cst_12 = arith.constant dense<0.000000e+00> : vector<1xf32>
    %21 = vector.multi_reduction <add>, %20, %cst_12 [1, 2] : vector<1x16x256xf32> to vector<1xf32>
    %22 = vector.shape_cast %21 : vector<1xf32> to vector<1x1x1xf32>
    %23 = vector.extract %22[0, 0, 0] : f32 from vector<1x1x1xf32>
    %24 = vector.shape_cast %0 : vector<16x256xf32> to vector<1x16x256xf32>
    %cst_13 = arith.constant dense<0xFF800000> : vector<1xf32>
    %25 = vector.multi_reduction <maximumf>, %24, %cst_13 [1, 2] : vector<1x16x256xf32> to vector<1xf32>
    %26 = vector.shape_cast %25 : vector<1xf32> to vector<1x1x1xf32>
    %27 = vector.extract %26[0, 0, 0] : f32 from vector<1x1x1xf32>
    %28 = vector.broadcast %15 : f32 to vector<1x8x128xf32>
    %c0_14 = arith.constant 0 : index
    %c0_15 = arith.constant 0 : index
    %c0_16 = arith.constant 0 : index
    %29 = vector.load %arg5[%c0_14, %c0_15, %c0_16] : memref<1x8x128xf32, #tpu.memory_space<vmem>>, vector<1x8x128xf32>
    tpu.vector_store %arg5[%c0_14, %c0_15, %c0_16], %28 {strides = array<i32>} : memref<1x8x128xf32, #tpu.memory_space<vmem>>, vector<1x8x128xf32>,
    %30 = vector.broadcast %23 : f32 to vector<1x8x128xf32>
    %c0_17 = arith.constant 0 : index
    %c0_18 = arith.constant 0 : index
    %c0_19 = arith.constant 0 : index
    %31 = vector.load %arg6[%c0_17, %c0_18, %c0_19] : memref<1x8x128xf32, #tpu.memory_space<vmem>>, vector<1x8x128xf32>
    tpu.vector_store %arg6[%c0_17, %c0_18, %c0_19], %30 {strides = array<i32>} : memref<1x8x128xf32, #tpu.memory_space<vmem>>, vector<1x8x128xf32>,
    %32 = vector.broadcast %27 : f32 to vector<1x8x128xf32>
    %c0_20 = arith.constant 0 : index
    %c0_21 = arith.constant 0 : index
    %c0_22 = arith.constant 0 : index
    %33 = vector.load %arg7[%c0_20, %c0_21, %c0_22] : memref<1x8x128xf32, #tpu.memory_space<vmem>>, vector<1x8x128xf32>
    tpu.vector_store %arg7[%c0_20, %c0_21, %c0_22], %32 {strides = array<i32>} : memref<1x8x128xf32, #tpu.memory_space<vmem>>, vector<1x8x128xf32>,
    return
  }
  func.func @transform_0(%arg0: i32) -> (i32, i32) {
    %c0_i32 = arith.constant 0 : i32
    %c0_i32_0 = arith.constant 0 : i32
    return %c0_i32, %arg0 : i32, i32
  }
  func.func @transform_1(%arg0: i32) -> (i32, i32) {
    %c0_i32 = arith.constant 0 : i32
    %c0_i32_0 = arith.constant 0 : i32
    return %c0_i32, %arg0 : i32, i32
  }
  func.func @transform_2(%arg0: i32) -> (i32, i32) {
    %c0_i32 = arith.constant 0 : i32
    %c0_i32_0 = arith.constant 0 : i32
    %c0_i32_1 = arith.constant 0 : i32
    return %c0_i32, %c0_i32_0 : i32, i32
  }
  func.func @transform_3(%arg0: i32) -> (i32, i32) {
    %c0_i32 = arith.constant 0 : i32
    %c0_i32_0 = arith.constant 0 : i32
    %c0_i32_1 = arith.constant 0 : i32
    return %c0_i32, %c0_i32_0 : i32, i32
  }
  func.func @transform_4(%arg0: i32) -> (i32, i32, i32) {
    %c0_i32 = arith.constant 0 : i32
    %c0_i32_0 = arith.constant 0 : i32
    %c0_i32_1 = arith.constant 0 : i32
    return %arg0, %c0_i32, %c0_i32_0 : i32, i32, i32
  }
  func.func @transform_5(%arg0: i32) -> (i32, i32, i32) {
    %c0_i32 = arith.constant 0 : i32
    %c0_i32_0 = arith.constant 0 : i32
    %c0_i32_1 = arith.constant 0 : i32
    return %arg0, %c0_i32, %c0_i32_0 : i32, i32, i32
  }
  func.func @transform_6(%arg0: i32) -> (i32, i32, i32) {
    %c0_i32 = arith.constant 0 : i32
    %c0_i32_0 = arith.constant 0 : i32
    %c0_i32_1 = arith.constant 0 : i32
    return %arg0, %c0_i32, %c0_i32_0 : i32, i32, i32
  }
}

</mosaic_0001>

<llo_original>
// kernel: tpu_custom_call.1
$region0: #{tpu_custom_call.1}
  #allocation0 [shape = 'u32[]', space=smem, size = 0x4, offset = 0x4, fixed_abs, tag = 'smem constant byte address 0x4 - core index']
  #allocation1 [shape = 'u32[72,128]{1,0:T(1,128)}', space=vmem, size = 0x9000, scoped, tag = 'internal scratch']
  %s0 = inlined_call_operand.vmem [shape: f32[8,256], index: 0, kind: input, shape index: {}]
  %s1 = inlined_call_operand.hbm [shape: f32[16,512], index: 1, kind: input, shape index: {}]
  %s2 = inlined_call_operand.vmem [shape: f32[16,8], index: 2, kind: input, shape index: {}]
  %s3 = inlined_call_operand.hbm [shape: f32[128,256], index: 3, kind: input, shape index: {}]
  %s4 = inlined_call_operand.hbm [shape: f32[2,8,128], index: 4, kind: output, shape index: {0}]
  %s5 = inlined_call_operand.hbm [shape: f32[2,8,128], index: 5, kind: output, shape index: {1}]
  %s6 = inlined_call_operand.hbm [shape: f32[2,8,128], index: 6, kind: output, shape index: {2}]
  %7 = xla_tuple %s4, %s5, %s6
  %s8 = sld [smem:[#allocation0]]
  $region73: #{tpu_custom_call.1} parent=0
    _
  %s10 = ssub.s32 1, %s8
  %s11 = scalar_select 0, %s10, %s8
  $region1: #{tpu_custom_call.1} parent=0
    #allocation2 [shape = 'u8[32768]{0}', space=vmem, size = 0x8000, scoped, tag = 'input window, operand 1']
    #allocation3 [shape = 's32[2]{0}', space=sflag, size = 0x8, scoped, tag = 'scoped memory for tpu_custom_call.1']
    #allocation4 [shape = 's32[2]{0}', space=sflag, size = 0x8, scoped, tag = 'scoped memory for tpu_custom_call.1']
    #allocation5 [shape = 'u8[131072]{0}', space=vmem, size = 0x20000, scoped, tag = 'input window, operand 3, single buffered']
    #allocation6 [shape = 's32[1]{0}', space=sflag, size = 0x4, scoped, tag = 'scoped memory for tpu_custom_call.1']
    #allocation7 [shape = 'u8[8192]{0}', space=vmem, size = 0x2000, scoped, tag = 'output window, operand 0']
    #allocation8 [shape = 'u8[8192]{0}', space=vmem, size = 0x2000, scoped, tag = 'output window, operand 1']
    #allocation9 [shape = 's32[2]{0}', space=sflag, size = 0x8, scoped, tag = 'scoped memory for tpu_custom_call.1']
    #allocation10 [shape = 'u8[8192]{0}', space=vmem, size = 0x2000, scoped, tag = 'output window, operand 2']
    %12 = vsyncpa [#allocation3], 0
    %s13 = scalar_lea.sflag [#allocation3], 1
    %14 = vsyncpa %s13, 0
    %15 = vsyncpa [#allocation6], 0
    %16 = vsyncpa [#allocation4], 0
    %s17 = scalar_lea.sflag [#allocation4], 1
    %18 = vsyncpa %s17, 0
    %19 = vsyncpa [#allocation9], 0
    %s20 = scalar_lea.sflag [#allocation9], 1
    %21 = vsyncpa %s20, 0
    loop: start=0, step=1, limit=4
    $region2: #{tpu_custom_call.1} parent=1 // loop_pre_header
      _
    $region3: #{tpu_custom_call.1} parent=1 // loop_header
      %s23 = sphi 0, %s27
      %p24 = scmp.ge.s32.totalorder %s23, 4
      %s33 = sphi 0, %s35
      %s36 = sphi 0, %s33
      %s37 = sphi 0, %s36
      %s53 = sphi 0, %s37
      %s59 = sphi 0, %s61
      %s62 = sphi 0, %s59
      %s63 = sphi 0, %s62
      %s79 = sphi 0, %s63
      %s83 = sphi 0, %s83
      %s85 = sphi 0, %s83
      %s86 = sphi 0, %s85
      %s100 = sphi 0, %s86
      %s104 = sphi 0, %s104
      %s106 = sphi 0, %s104
      %s107 = sphi 0, %s106
      %s121 = sphi 0, %s107
      %s127 = sphi 0, %s129
      %s130 = sphi 0, %s127
      %s131 = sphi 0, %s130
      %s147 = sphi 0, %s131
      %s153 = sphi 0, %s155
      %s156 = sphi 0, %s153
      %s157 = sphi 0, %s156
      %s173 = sphi 0, %s157
      %s179 = sphi 0, %s181
      %s182 = sphi 0, %s179
      %s183 = sphi 0, %s182
      %s199 = sphi 0, %s183
    $region4: #{tpu_custom_call.1} parent=1 // loop_header_branch
      %26 = sbr.rel (%p24) target = $region8
    $region5: #{tpu_custom_call.1} parent=1 // loop_body
      %s28 = ssub.s32 %s23, 1
      %s29 = ssub.s32 %s23, 2
      %s30 = sadd.s32 %s23, 1
      %s31 = ssub.s32 %s23, %s30
      %p32 = scmp.eq.s32.totalorder %s31, 0
      %s34 = sadd.s32 %s33, 1
      %s35 = scalar_select %p32, %s33, %s34
      %p38 = pneg %p32
      %p39 = scmp.eq.s32.totalorder %s23, 1
      %p40 = por %p38, %p39
      %p41 = scmp.ne.s32.totalorder %s33, %s36
      %p42 = scmp.eq.s32.totalorder %s23, 0
      %p43 = por %p41, %p42
      %p44 = scmp.ne.s32.totalorder %s33, %s36
      %p45 = scmp.eq.s32.totalorder %s28, 1
      %p46 = por %p44, %p45
      %p47 = scmp.ne.s32.totalorder %s36, %s37
      %p48 = scmp.eq.s32.totalorder %s28, 0
      %p49 = por %p47, %p48
      %p50 = scmp.ne.s32.totalorder %s36, %s37
      %p51 = scmp.eq.s32.totalorder %s29, 1
      %p52 = por %p50, %p51
      %p54 = scmp.ne.s32.totalorder %s37, %s53
      %p55 = scmp.eq.s32.totalorder %s29, 0
      %p56 = por %p54, %p55
      %s57 = ssub.s32 %s23, %s30
      %p58 = scmp.eq.s32.totalorder %s57, 0
      %s60 = sadd.s32 %s59, 1
      %s61 = scalar_select %p58, %s59, %s60
      %p64 = pneg %p58
      %p65 = scmp.eq.s32.totalorder %s23, 1
      %p66 = por %p64, %p65
      %p67 = scmp.ne.s32.totalorder %s59, %s62
      %p68 = scmp.eq.s32.totalorder %s23, 0
      %p69 = por %p67, %p68
      %p70 = scmp.ne.s32.totalorder %s59, %s62
      %p71 = scmp.eq.s32.totalorder %s28, 1
      %p72 = por %p70, %p71
      %p73 = scmp.ne.s32.totalorder %s62, %s63
      %p74 = scmp.eq.s32.totalorder %s28, 0
      %p75 = por %p73, %p74
      %p76 = scmp.ne.s32.totalorder %s62, %s63
      %p77 = scmp.eq.s32.totalorder %s29, 1
      %p78 = por %p76, %p77
      %p80 = scmp.ne.s32.totalorder %s63, %s79
      %p81 = scmp.eq.s32.totalorder %s29, 0
      %p82 = por %p80, %p81
      %s84 = sadd.s32 %s83, 1
      %p87 = scmp.eq.s32.totalorder %s23, 1
      %p88 = scmp.ne.s32.totalorder %s83, %s85
      %p89 = scmp.eq.s32.totalorder %s23, 0
      %p90 = por %p88, %p89
      %p91 = scmp.ne.s32.totalorder %s83, %s85
      %p92 = scmp.eq.s32.totalorder %s28, 1
      %p93 = por %p91, %p92
      %p94 = scmp.ne.s32.totalorder %s85, %s86
      %p95 = scmp.eq.s32.totalorder %s28, 0
      %p96 = por %p94, %p95
      %p97 = scmp.ne.s32.totalorder %s85, %s86
      %p98 = scmp.eq.s32.totalorder %s29, 1
      %p99 = por %p97, %p98
      %p101 = scmp.ne.s32.totalorder %s86, %s100
      %p102 = scmp.eq.s32.totalorder %s29, 0
      %p103 = por %p101, %p102
      %s105 = sadd.s32 %s104, 1
      %p108 = scmp.eq.s32.totalorder %s23, 1
      %p109 = scmp.ne.s32.totalorder %s104, %s106
      %p110 = scmp.eq.s32.totalorder %s23, 0
      %p111 = por %p109, %p110
      %p112 = scmp.ne.s32.totalorder %s104, %s106
      %p113 = scmp.eq.s32.totalorder %s28, 1
      %p114 = por %p112, %p113
      %p115 = scmp.ne.s32.totalorder %s106, %s107
      %p116 = scmp.eq.s32.totalorder %s28, 0
      %p117 = por %p115, %p116
      %p118 = scmp.ne.s32.totalorder %s106, %s107
      %p119 = scmp.eq.s32.totalorder %s29, 1
      %p120 = por %p118, %p119
      %p122 = scmp.ne.s32.totalorder %s107, %s121
      %p123 = scmp.eq.s32.totalorder %s29, 0
      %p124 = por %p122, %p123
      %s125 = ssub.s32 %s23, %s30
      %p126 = scmp.eq.s32.totalorder %s125, 0
      %s128 = sadd.s32 %s127, 1
      %s129 = scalar_select %p126, %s127, %s128
      %p132 = pneg %p126
      %p133 = scmp.eq.s32.totalorder %s23, 1
      %p134 = por %p132, %p133
      %p135 = scmp.ne.s32.totalorder %s127, %s130
      %p136 = scmp.eq.s32.totalorder %s23, 0
      %p137 = por %p135, %p136
      %p138 = scmp.ne.s32.totalorder %s127, %s130
      %p139 = scmp.eq.s32.totalorder %s28, 1
      %p140 = por %p138, %p139
      %p141 = scmp.ne.s32.totalorder %s130, %s131
      %p142 = scmp.eq.s32.totalorder %s28, 0
      %p143 = por %p141, %p142
      %p144 = scmp.ne.s32.totalorder %s130, %s131
      %p145 = scmp.eq.s32.totalorder %s29, 1
      %p146 = por %p144, %p145
      %p148 = scmp.ne.s32.totalorder %s131, %s147
      %p149 = scmp.eq.s32.totalorder %s29, 0
      %p150 = por %p148, %p149
      %s151 = ssub.s32 %s23, %s30
      %p152 = scmp.eq.s32.totalorder %s151, 0
      %s154 = sadd.s32 %s153, 1
      %s155 = scalar_select %p152, %s153, %s154
      %p158 = pneg %p152
      %p159 = scmp.eq.s32.totalorder %s23, 1
      %p160 = por %p158, %p159
      %p161 = scmp.ne.s32.totalorder %s153, %s156
      %p162 = scmp.eq.s32.totalorder %s23, 0
      %p163 = por %p161, %p162
      %p164 = scmp.ne.s32.totalorder %s153, %s156
      %p165 = scmp.eq.s32.totalorder %s28, 1
      %p166 = por %p164, %p165
      %p167 = scmp.ne.s32.totalorder %s156, %s157
      %p168 = scmp.eq.s32.totalorder %s28, 0
      %p169 = por %p167, %p168
      %p170 = scmp.ne.s32.totalorder %s156, %s157
      %p171 = scmp.eq.s32.totalorder %s29, 1
      %p172 = por %p170, %p171
      %p174 = scmp.ne.s32.totalorder %s157, %s173
      %p175 = scmp.eq.s32.totalorder %s29, 0
      %p176 = por %p174, %p175
      %s177 = ssub.s32 %s23, %s30
      %p178 = scmp.eq.s32.totalorder %s177, 0
      %s180 = sadd.s32 %s179, 1
      %s181 = scalar_select %p178, %s179, %s180
      %p184 = pneg %p178
      %p185 = scmp.eq.s32.totalorder %s23, 1
      %p186 = por %p184, %p185
      %p187 = scmp.ne.s32.totalorder %s179, %s182
      %p188 = scmp.eq.s32.totalorder %s23, 0
      %p189 = por %p187, %p188
      %p190 = scmp.ne.s32.totalorder %s179, %s182
      %p191 = scmp.eq.s32.totalorder %s28, 1
      %p192 = por %p190, %p191
      %p193 = scmp.ne.s32.totalorder %s182, %s183
      %p194 = scmp.eq.s32.totalorder %s28, 0
      %p195 = por %p193, %p194
      %p196 = scmp.ne.s32.totalorder %s182, %s183
      %p197 = scmp.eq.s32.totalorder %s29, 1
      %p198 = por %p196, %p197
      %p200 = scmp.ne.s32.totalorder %s183, %s199
      %p201 = scmp.eq.s32.totalorder %s29, 0
      %p202 = por %p200, %p201
      %p203 = scmp.le.s32.totalorder 1, %s23
      %p204 = scmp.lt.s32.totalorder %s23, 3
      %p205 = pnand %p203, %p204
      %p206 = pneg %p205
      // Predicated region
      $region9: #{tpu_custom_call.1} parent=5 // pred_check
        _
      $region10: #{tpu_custom_call.1} parent=5 // pred_check_branch
        %208 = sbr.rel (%p205) target = $region12
      $region11: #{tpu_custom_call.1} parent=5 // pred_region
        %s209 = ssub.s32 %s23, 1
        // Predicated region
        $region13: #{tpu_custom_call.1} parent=11 // pred_check
          %p210 = pneg %p96
        $region14: #{tpu_custom_call.1} parent=11 // pred_check_branch
          %212 = sbr.rel (%p210) target = $region16
        $region15: #{tpu_custom_call.1} parent=11 // pred_region
          _
        $region16: #{tpu_custom_call.1} parent=11 // pred_fallthru
          _
        // Predicated region
        $region17: #{tpu_custom_call.1} parent=11 // pred_check
          %p213 = pneg %p117
        $region18: #{tpu_custom_call.1} parent=11 // pred_check_branch
          %215 = sbr.rel (%p213) target = $region20
        $region19: #{tpu_custom_call.1} parent=11 // pred_region
          %217 = vsyncadd [#allocation6], 0
          %s218 = sshll.u32 %s3, 4
          %s219 = int_to_ptr.hbm [resolvable:$true] %s218
          %s220 = sshll.u32 [#allocation5], 4
          %s221 = int_to_ptr.vmem [resolvable:$true] %s220
          %226 = dma.hbm_to_vmem [thread:$0]  %s219, 4096, %s221, [#allocation6], 256, 256, 16
        $region20: #{tpu_custom_call.1} parent=11 // pred_fallthru
          _
      $region12: #{tpu_custom_call.1} parent=5 // pred_fallthru
        _
      %p227 = scmp.lt.s32.totalorder %s23, 2
      // Predicated region
      $region21: #{tpu_custom_call.1} parent=5 // pred_check
        %p228 = pneg %p227
      $region22: #{tpu_custom_call.1} parent=5 // pred_check_branch
        %230 = sbr.rel (%p228) target = $region24
      $region23: #{tpu_custom_call.1} parent=5 // pred_region
        // Predicated region
        $region25: #{tpu_custom_call.1} parent=23 // pred_check
          %p231 = pneg %p43
        $region26: #{tpu_custom_call.1} parent=23 // pred_check_branch
          %233 = sbr.rel (%p231) target = $region28
        $region27: #{tpu_custom_call.1} parent=23 // pred_region
          %p234 = scmp.lt.s32.totalorder %s23, 1
          %s235 = scalar_select %p234, %s23, 1
          %s236 = smul.addr %s235, 8
          %s237 = scalar_lea.vmem %s0, %s236
        $region28: #{tpu_custom_call.1} parent=23 // pred_fallthru
          _
        // Predicated region
        $region29: #{tpu_custom_call.1} parent=23 // pred_check
          %p238 = pneg %p69
        $region30: #{tpu_custom_call.1} parent=23 // pred_check_branch
          %240 = sbr.rel (%p238) target = $region32
        $region31: #{tpu_custom_call.1} parent=23 // pred_region
          %s241 = sand.u32 %s59, 1
          %s242 = scalar_lea.sflag [#allocation3], %s241
          %s243 = sand.u32 %s59, 1
          %s244 = smul.addr %s243, 32
          %s245 = scalar_lea.vmem [#allocation2], %s244
          %s246 = smul.u32 2, %s23
          %248 = vsyncadd %s242, 0
          %s249 = smul.addr %s246, 8
          %s250 = scalar_lea.hbm %s1, %s249
          %s251 = sshll.u32 %s250, 4
          %s252 = int_to_ptr.hbm [resolvable:$true] %s251
          %s253 = sshll.u32 %s245, 4
          %s254 = int_to_ptr.vmem [resolvable:$true] %s253
          %259 = dma.hbm_to_vmem [thread:$0]  %s252, 512, %s254, %s242, 512, 256, 16
        $region32: #{tpu_custom_call.1} parent=23 // pred_fallthru
          _
      $region24: #{tpu_custom_call.1} parent=5 // pred_fallthru
        _
      %p260 = scmp.le.s32.totalorder 1, %s23
      %p261 = scmp.lt.s32.totalorder %s23, 3
      %p262 = pnand %p260, %p261
      %p263 = pneg %p262
      // Predicated region
      $region33: #{tpu_custom_call.1} parent=5 // pred_check
        _
      $region34: #{tpu_custom_call.1} parent=5 // pred_check_branch
        %265 = sbr.rel (%p262) target = $region36
      $region35: #{tpu_custom_call.1} parent=5 // pred_region
        %s266 = ssub.s32 %s23, 1
        %s267 = sand.u32 %s62, 1
        %s268 = scalar_lea.sflag [#allocation3], %s267
        %s269 = sand.u32 %s62, 1
        %s270 = smul.addr %s269, 32
        %s271 = scalar_lea.vmem [#allocation2], %s270
        // Predicated region
        $region37: #{tpu_custom_call.1} parent=35 // pred_check
          %p272 = pneg %p75
        $region38: #{tpu_custom_call.1} parent=35 // pred_check_branch
          %274 = sbr.rel (%p272) target = $region40
        $region39: #{tpu_custom_call.1} parent=35 // pred_region
          %276 = dma.done %s268, 512
        $region40: #{tpu_custom_call.1} parent=35 // pred_fallthru
          _
        // Predicated region
        $region41: #{tpu_custom_call.1} parent=35 // pred_check
          %p277 = pneg %p117
        $region42: #{tpu_custom_call.1} parent=35 // pred_check_branch
          %279 = sbr.rel (%p277) target = $region44
        $region43: #{tpu_custom_call.1} parent=35 // pred_region
          %281 = dma.done [#allocation6], 4096
        $region44: #{tpu_custom_call.1} parent=35 // pred_fallthru
          _
        %p282 = scmp.lt.s32.totalorder %s28, 1
        %s283 = scalar_select %p282, %s28, 1
        %s284 = smul.addr %s283, 8
        %s285 = scalar_lea.vmem %s0, %s284
        %p286 = pneg %p49
        %p287 = pneg %p46
        %s288 = sand.u32 %s62, 1
        %s289 = scalar_lea.sflag [#allocation3], %s288
        %s290 = sand.u32 %s62, 1
        %s291 = smul.addr %s290, 32
        %s292 = scalar_lea.vmem [#allocation2], %s291
        %p293 = pneg %p75
        %p294 = pneg %p72
        %p295 = pneg %p96
        %p296 = pneg %p93
        %p297 = pneg %p117
        %p298 = pneg %p114
        %p299 = pneg %p143
        %p300 = pneg %p140
        %s301 = sand.u32 %s130, 1
        %s302 = scalar_lea.sflag [#allocation4], %s301
        %s303 = sand.u32 %s130, 1
        %s304 = smul.addr %s303, 8
        %s305 = scalar_lea.vmem [#allocation7], %s304
        %p306 = pneg %p169
        %p307 = pneg %p166
        %s308 = sand.u32 %s28, 1
        %s309 = scalar_lea.sflag [#allocation9], %s308
        %s310 = sand.u32 %s156, 1
        %s311 = smul.addr %s310, 8
        %s312 = scalar_lea.vmem [#allocation8], %s311
        %p313 = pneg %p195
        %p314 = pneg %p192
        %s315 = sand.u32 %s28, 1
        %s316 = scalar_lea.sflag [#allocation9], %s315
        %s317 = sand.u32 %s182, 1
        %s318 = smul.addr %s317, 8
        %s319 = scalar_lea.vmem [#allocation10], %s318
        %p320 = scmp.lt.s32.totalorder %s28, 1
        %s321 = scalar_select %p320, %s28, 1
        %s322 = smul.addr %s321, 8
        %s323 = scalar_lea.vmem %s0, %s322
        %s324 = smul.u32 2, %s28
        %v325 = vld [vmem:[%s271] sm:$0xff]
        %v326 = vld [vmem:[%s271 + $0x8] sm:$0xff]
        %v327 = vld [vmem:[%s271 + $0x10] sm:$0xff]
        %v328 = vld [vmem:[%s271 + $0x18] sm:$0xff]
        %v329 = vld [vmem:[%s323] sm:$0xff]
        %v330 = vld [vmem:[%s2] sm:$0xff]
        %v331 = vld [vmem:[%s2 + $0x8] sm:$0xff]
        %vm332 = vcmask 64512
        %v334 = vsel %vm332, %v330, 0
        %v337 = vsel %vm332, %v331, 0
        %339 = vmatpush.msra.mxu0 0.0
        %340 = vmatpush.msra.mxu0 0.0
        %341 = vmatpush.msra.mxu0 0.0
        %342 = vmatpush.msra.mxu0 0.0
        %343 = vmatpush.msra.mxu0 0.0
        %344 = vmatpush.msra.mxu0 0.0
        %345 = vmatpush.msra.mxu0 0.0
        %346 = vmatpush.msra.mxu0 0.0
        %347 = vmatpush.msra.mxu0 0.0
        %348 = vmatpush.msra.mxu0 0.0
        %349 = vmatpush.msra.mxu0 0.0
        %350 = vmatpush.msra.mxu0 0.0
        %351 = vmatpush.msra.mxu0 0.0
        %352 = vmatpush.msra.mxu0 0.0
        %353 = vmatpush.msra.mxu0 0.0
        %354 = vmatpush.msra.mxu0 %v329
        %355 = vmatmul.f32.gmra.mxu0 %v334
        %v356 = vpop.f32.mrf.mxu0
        %v357 = vadd.f32 0.0, %v356
        %358 = vmatmul.f32.gmra.mxu0 %v337
        %v359 = vpop.f32.mrf.mxu0
        %v360 = vadd.f32 0.0, %v359
        %361 = vdwg.mxu0
        %v362 = vld [vmem:[#allocation5] sm:$0xff]
        %v363 = vld [vmem:[#allocation5 + $0x8] sm:$0xff]
        %v364 = vld [vmem:[#allocation5 + $0x10] sm:$0xff]
        %v365 = vld [vmem:[#allocation5 + $0x18] sm:$0xff]
        %v366 = vld [vmem:[#allocation5 + $0x20] sm:$0xff]
        %v367 = vld [vmem:[#allocation5 + $0x28] sm:$0xff]
        %v368 = vld [vmem:[#allocation5 + $0x30] sm:$0xff]
        %v369 = vld [vmem:[#allocation5 + $0x38] sm:$0xff]
        %v370 = vld [vmem:[#allocation5 + $0x40] sm:$0xff]
        %v371 = vld [vmem:[#allocation5 + $0x48] sm:$0xff]
        %v372 = vld [vmem:[#allocation5 + $0x50] sm:$0xff]
        %v373 = vld [vmem:[#allocation5 + $0x58] sm:$0xff]
        %v374 = vld [vmem:[#allocation5 + $0x60] sm:$0xff]
        %v375 = vld [vmem:[#allocation5 + $0x68] sm:$0xff]
        %v376 = vld [vmem:[#allocation5 + $0x70] sm:$0xff]
        %v377 = vld [vmem:[#allocation5 + $0x78] sm:$0xff]
        %v378 = vld [vmem:[#allocation5 + $0x80] sm:$0xff]
        %v379 = vld [vmem:[#allocation5 + $0x88] sm:$0xff]
        %v380 = vld [vmem:[#allocation5 + $0x90] sm:$0xff]
        %v381 = vld [vmem:[#allocation5 + $0x98] sm:$0xff]
        %v382 = vld [vmem:[#allocation5 + $0xa0] sm:$0xff]
        %v383 = vld [vmem:[#allocation5 + $0xa8] sm:$0xff]
        %v384 = vld [vmem:[#allocation5 + $0xb0] sm:$0xff]
        %v385 = vld [vmem:[#allocation5 + $0xb8] sm:$0xff]
        %v386 = vld [vmem:[#allocation5 + $0xc0] sm:$0xff]
        %v387 = vld [vmem:[#allocation5 + $0xc8] sm:$0xff]
        %v388 = vld [vmem:[#allocation5 + $0xd0] sm:$0xff]
        %v389 = vld [vmem:[#allocation5 + $0xd8] sm:$0xff]
        %v390 = vld [vmem:[#allocation5 + $0xe0] sm:$0xff]
        %v391 = vld [vmem:[#allocation5 + $0xe8] sm:$0xff]
        %v392 = vld [vmem:[#allocation5 + $0xf0] sm:$0xff]
        %v393 = vld [vmem:[#allocation5 + $0xf8] sm:$0xff]
        %394 = vmatpush.msra.mxu0 %v392
        %395 = vmatpush.msra.mxu0 %v390
        %396 = vmatpush.msra.mxu0 %v388
        %397 = vmatpush.msra.mxu0 %v386
        %398 = vmatpush.msra.mxu0 %v384
        %399 = vmatpush.msra.mxu0 %v382
        %400 = vmatpush.msra.mxu0 %v380
        %401 = vmatpush.msra.mxu0 %v378
        %402 = vmatpush.msra.mxu0 %v376
        %403 = vmatpush.msra.mxu0 %v374
        %404 = vmatpush.msra.mxu0 %v372
        %405 = vmatpush.msra.mxu0 %v370
        %406 = vmatpush.msra.mxu0 %v368
        %407 = vmatpush.msra.mxu0 %v366
        %408 = vmatpush.msra.mxu0 %v364
        %409 = vmatpush.msra.mxu0 %v362
        %410 = vmatmul.f32.gmra.mxu0 %v357
        %v411 = vpop.f32.mrf.mxu0
        %v412 = vadd.f32 0.0, %v411
        %413 = vmatmul.f32.gmra.mxu0 %v360
        %v414 = vpop.f32.mrf.mxu0
        %v415 = vadd.f32 0.0, %v414
        %416 = vdwg.mxu0
        %417 = vmatpush.msra.mxu0 %v393
        %418 = vmatpush.msra.mxu0 %v391
        %419 = vmatpush.msra.mxu0 %v389
        %420 = vmatpush.msra.mxu0 %v387
        %421 = vmatpush.msra.mxu0 %v385
        %422 = vmatpush.msra.mxu0 %v383
        %423 = vmatpush.msra.mxu0 %v381
        %424 = vmatpush.msra.mxu0 %v379
        %425 = vmatpush.msra.mxu0 %v377
        %426 = vmatpush.msra.mxu0 %v375
        %427 = vmatpush.msra.mxu0 %v373
        %428 = vmatpush.msra.mxu0 %v371
        %429 = vmatpush.msra.mxu0 %v369
        %430 = vmatpush.msra.mxu0 %v367
        %431 = vmatpush.msra.mxu0 %v365
        %432 = vmatpush.msra.mxu0 %v363
        %433 = vmatmul.f32.gmra.mxu0 %v357
        %v434 = vpop.f32.mrf.mxu0
        %v435 = vadd.f32 0.0, %v434
        %436 = vmatmul.f32.gmra.mxu0 %v360
        %v437 = vpop.f32.mrf.mxu0
        %v438 = vadd.f32 0.0, %v437
        %439 = vdwg.mxu0
        %v440 = vmax.f32 %v412, 1e-06
        %v441 = vmax.f32 %v435, 1e-06
        %v442 = vmax.f32 %v415, 1e-06
        %v443 = vmax.f32 %v438, 1e-06
        %v444 = vmax.f32 %v325, 1e-06
        %v445 = vmax.f32 %v326, 1e-06
        %v446 = vmax.f32 %v327, 1e-06
        %v447 = vmax.f32 %v328, 1e-06
        %v448 = vrcp.pop %v444
        %v449 = vmul.f32 %v444, %v448
        %v450 = vsub.f32 1.0, %v449
        %v451 = vmul.f32 %v448, %v450
        %v452 = vadd.f32 %v448, %v451
        %vm453 = vweird.f32 %v444
        %vm454 = vweird.f32 %v448
        %vm455 = vmor %vm453, %vm454
        %v456 = vsel %vm455, %v448, %v452
        %v457 = vand.u32 2147483647, %v444
        %vm458 = vcmp.eq.f32.partialorder %v457, 8.507059e+37
        %v459 = vand.u32 %v444, 2147483648
        %v460 = vor.u32 1.1754944e-38, %v459
        %v461 = vsel %vm458, %v460, %v456
        %v462 = vmul.f32 %v440, %v461
        %v463 = vrcp.pop %v445
        %v464 = vmul.f32 %v445, %v463
        %v465 = vsub.f32 1.0, %v464
        %v466 = vmul.f32 %v463, %v465
        %v467 = vadd.f32 %v463, %v466
        %vm468 = vweird.f32 %v445
        %vm469 = vweird.f32 %v463
        %vm470 = vmor %vm468, %vm469
        %v471 = vsel %vm470, %v463, %v467
        %v472 = vand.u32 2147483647, %v445
        %vm473 = vcmp.eq.f32.partialorder %v472, 8.507059e+37
        %v474 = vand.u32 %v445, 2147483648
        %v475 = vor.u32 1.1754944e-38, %v474
        %v476 = vsel %vm473, %v475, %v471
        %v477 = vmul.f32 %v441, %v476
        %v478 = vrcp.pop %v446
        %v479 = vmul.f32 %v446, %v478
        %v480 = vsub.f32 1.0, %v479
        %v481 = vmul.f32 %v478, %v480
        %v482 = vadd.f32 %v478, %v481
        %vm483 = vweird.f32 %v446
        %vm484 = vweird.f32 %v478
        %vm485 = vmor %vm483, %vm484
        %v486 = vsel %vm485, %v478, %v482
        %v487 = vand.u32 2147483647, %v446
        %vm488 = vcmp.eq.f32.partialorder %v487, 8.507059e+37
        %v489 = vand.u32 %v446, 2147483648
        %v490 = vor.u32 1.1754944e-38, %v489
        %v491 = vsel %vm488, %v490, %v486
        %v492 = vmul.f32 %v442, %v491
        %v493 = vrcp.pop %v447
        %v494 = vmul.f32 %v447, %v493
        %v495 = vsub.f32 1.0, %v494
        %v496 = vmul.f32 %v493, %v495
        %v497 = vadd.f32 %v493, %v496
        %vm498 = vweird.f32 %v447
        %vm499 = vweird.f32 %v493
        %vm500 = vmor %vm498, %vm499
        %v501 = vsel %vm500, %v493, %v497
        %v502 = vand.u32 2147483647, %v447
        %vm503 = vcmp.eq.f32.partialorder %v502, 8.507059e+37
        %v504 = vand.u32 %v447, 2147483648
        %v505 = vor.u32 1.1754944e-38, %v504
        %v506 = vsel %vm503, %v505, %v501
        %v507 = vmul.f32 %v443, %v506
        %v508 = vlog2.pop %v462
        %v509 = vmul.f32 %v508, 0.6931472
        %v510 = vlog2.pop %v477
        %v511 = vmul.f32 %v510, 0.6931472
        %v512 = vlog2.pop %v492
        %v513 = vmul.f32 %v512, 0.6931472
        %v514 = vlog2.pop %v507
        %v515 = vmul.f32 %v514, 0.6931472
        %v516 = vadd.f32 %v509, %v511
        %v517 = vadd.f32 %v516, %v513
        %v518 = vadd.f32 %v517, %v515
        %519 = vadd.xlane.f32.xlu0 %v518
        %v520 = vpop.xlane.xlu0 %519
        %v521 = vrot.slane %v520, 4
        %v522 = vadd.f32 %v520, %v521
        %v523 = vrot.slane %v522, 2
        %v524 = vadd.f32 %v522, %v523
        %v525 = vrot.slane %v524, 1
        %v526 = vadd.f32 %v524, %v525
        %s527 = vtos %v526
        %s528 = smul.f32 %s527, 0.00024414063
        %v529 = vstv %s528
        %v530 = vsub.f32 %v509, %v529
        %v531 = vsub.f32 %v511, %v529
        %v532 = vsub.f32 %v513, %v529
        %v533 = vsub.f32 %v515, %v529
        %v534 = vmul.f32 %v530, %v530
        %v535 = vmul.f32 %v531, %v531
        %v536 = vmul.f32 %v532, %v532
        %v537 = vmul.f32 %v533, %v533
        %v538 = vadd.f32 %v534, %v535
        %v539 = vadd.f32 %v538, %v536
        %v540 = vadd.f32 %v539, %v537
        %541 = vadd.xlane.f32.xlu0 %v540
        %v542 = vpop.xlane.xlu0 %541
        %v543 = vrot.slane %v542, 4
        %v544 = vadd.f32 %v542, %v543
        %v545 = vrot.slane %v544, 2
        %v546 = vadd.f32 %v544, %v545
        %v547 = vrot.slane %v546, 1
        %v548 = vadd.f32 %v546, %v547
        %s549 = vtos %v548
        %v550 = vmax.f32 %v325, %v326
        %v551 = vmax.f32 %v327, %v328
        %v552 = vmax.f32 %v550, %v551
        %553 = vmax.xlane.f32.xlu0 %v552
        %v554 = vpop.xlane.xlu0 %553
        %v555 = vrot.slane %v554, 4
        %v556 = vmax.f32 %v554, %v555
        %v557 = vrot.slane %v556, 2
        %v558 = vmax.f32 %v556, %v557
        %v559 = vrot.slane %v558, 1
        %v560 = vmax.f32 %v558, %v559
        %s561 = vtos %v560
        %v562 = vstv %s527
        %563 = vst [vmem:[%s305] sm:$0xff] %v562
        %v564 = vstv %s549
        %565 = vst [vmem:[%s312] sm:$0xff] %v564
        %v566 = vstv %s561
        %567 = vst [vmem:[%s319] sm:$0xff] %v566
        %s568 = sand.u32 %s130, 1
        %s569 = scalar_lea.sflag [#allocation4], %s568
        %s570 = sand.u32 %s130, 1
        %s571 = smul.addr %s570, 8
        %s572 = scalar_lea.vmem [#allocation7], %s571
        %s573 = sand.u32 %s28, 1
        %s574 = scalar_lea.sflag [#allocation9], %s573
        %s575 = sand.u32 %s156, 1
        %s576 = smul.addr %s575, 8
        %s577 = scalar_lea.vmem [#allocation8], %s576
        %s578 = sand.u32 %s28, 1
        %s579 = scalar_lea.sflag [#allocation9], %s578
        %s580 = sand.u32 %s182, 1
        %s581 = smul.addr %s580, 8
        %s582 = scalar_lea.vmem [#allocation10], %s581
        // Predicated region
        $region45: #{tpu_custom_call.1} parent=35 // pred_check
          %p583 = pneg %p140
        $region46: #{tpu_custom_call.1} parent=35 // pred_check_branch
          %585 = sbr.rel (%p583) target = $region48
        $region47: #{tpu_custom_call.1} parent=35 // pred_region
          %587 = vsyncadd %s569, 0
          %s588 = smul.addr %s28, 8
          %s589 = scalar_lea.hbm %s4, %s588
          %s591 = sshll.u32 %s572, 4
          %s592 = int_to_ptr.vmem [resolvable:$true] %s591
          %s593 = sshll.u32 %s589, 4
          %s594 = int_to_ptr.hbm [resolvable:$true] %s593
          %596 = dma.vmem_to_hbm [thread:$0]  %s592, 128, %s594, %s569
        $region48: #{tpu_custom_call.1} parent=35 // pred_fallthru
          _
        // Predicated region
        $region49: #{tpu_custom_call.1} parent=35 // pred_check
          %p597 = pneg %p166
        $region50: #{tpu_custom_call.1} parent=35 // pred_check_branch
          %599 = sbr.rel (%p597) target = $region52
        $region51: #{tpu_custom_call.1} parent=35 // pred_region
          %601 = vsyncadd %s574, 0
          %s602 = smul.addr %s28, 8
          %s603 = scalar_lea.hbm %s5, %s602
          %s605 = sshll.u32 %s577, 4
          %s606 = int_to_ptr.vmem [resolvable:$true] %s605
          %s607 = sshll.u32 %s603, 4
          %s608 = int_to_ptr.hbm [resolvable:$true] %s607
          %610 = dma.vmem_to_hbm [thread:$0]  %s606, 128, %s608, %s574
        $region52: #{tpu_custom_call.1} parent=35 // pred_fallthru
          _
        // Predicated region
        $region53: #{tpu_custom_call.1} parent=35 // pred_check
          %p611 = pneg %p192
        $region54: #{tpu_custom_call.1} parent=35 // pred_check_branch
          %613 = sbr.rel (%p611) target = $region56
        $region55: #{tpu_custom_call.1} parent=35 // pred_region
          %615 = vsyncadd %s579, 0
          %s616 = smul.addr %s28, 8
          %s617 = scalar_lea.hbm %s6, %s616
          %s619 = sshll.u32 %s582, 4
          %s620 = int_to_ptr.vmem [resolvable:$true] %s619
          %s621 = sshll.u32 %s617, 4
          %s622 = int_to_ptr.hbm [resolvable:$true] %s621
          %624 = dma.vmem_to_hbm [thread:$0]  %s620, 128, %s622, %s579
        $region56: #{tpu_custom_call.1} parent=35 // pred_fallthru
          _
      $region36: #{tpu_custom_call.1} parent=5 // pred_fallthru
        _
      %p625 = scmp.le.s32.totalorder 2, %s23
      // Predicated region
      $region57: #{tpu_custom_call.1} parent=5 // pred_check
        %p626 = pneg %p625
      $region58: #{tpu_custom_call.1} parent=5 // pred_check_branch
        %628 = sbr.rel (%p626) target = $region60
      $region59: #{tpu_custom_call.1} parent=5 // pred_region
        %s629 = ssub.s32 %s23, 2
        // Predicated region
        $region61: #{tpu_custom_call.1} parent=59 // pred_check
          %p630 = pneg %p146
        $region62: #{tpu_custom_call.1} parent=59 // pred_check_branch
          %632 = sbr.rel (%p630) target = $region64
        $region63: #{tpu_custom_call.1} parent=59 // pred_region
          %s633 = sand.u32 %s131, 1
          %s634 = scalar_lea.sflag [#allocation4], %s633
          %s635 = sand.u32 %s131, 1
          %s636 = smul.addr %s635, 8
          %s637 = scalar_lea.vmem [#allocation7], %s636
          %639 = dma.done %s634, 128
        $region64: #{tpu_custom_call.1} parent=59 // pred_fallthru
          _
        // Predicated region
        $region65: #{tpu_custom_call.1} parent=59 // pred_check
          %p640 = pneg %p172
        $region66: #{tpu_custom_call.1} parent=59 // pred_check_branch
          %642 = sbr.rel (%p640) target = $region68
        $region67: #{tpu_custom_call.1} parent=59 // pred_region
          %s643 = sand.u32 %s29, 1
          %s644 = scalar_lea.sflag [#allocation9], %s643
          %s645 = sand.u32 %s157, 1
          %s646 = smul.addr %s645, 8
          %s647 = scalar_lea.vmem [#allocation8], %s646
          %649 = dma.done %s644, 128
        $region68: #{tpu_custom_call.1} parent=59 // pred_fallthru
          _
        // Predicated region
        $region69: #{tpu_custom_call.1} parent=59 // pred_check
          %p650 = pneg %p198
        $region70: #{tpu_custom_call.1} parent=59 // pred_check_branch
          %652 = sbr.rel (%p650) target = $region72
        $region71: #{tpu_custom_call.1} parent=59 // pred_region
          %s653 = sand.u32 %s29, 1
          %s654 = scalar_lea.sflag [#allocation9], %s653
          %s655 = sand.u32 %s183, 1
          %s656 = smul.addr %s655, 8
          %s657 = scalar_lea.vmem [#allocation10], %s656
          %659 = dma.done %s654, 128
        $region72: #{tpu_custom_call.1} parent=59 // pred_fallthru
          _
      $region60: #{tpu_custom_call.1} parent=5 // pred_fallthru
        _
    $region6: #{tpu_custom_call.1} parent=1 // loop_footer
      %s27 = sadd.s32 1, %s23
    $region7: #{tpu_custom_call.1} parent=1 // loop_footer_branch
      %22 = sbr.rel target = $region3
    $region8: #{tpu_custom_call.1} parent=1 // loop_exit
      _
    %660 = vsyncpa [#allocation3], 1
    %s661 = scalar_lea.sflag [#allocation3], 1
    %662 = vsyncpa %s661, 1
    %663 = vsyncpa [#allocation6], 1
    %664 = vsyncpa [#allocation4], 1
    %s665 = scalar_lea.sflag [#allocation4], 1
    %666 = vsyncpa %s665, 1
    %667 = vsyncpa [#allocation9], 1
    %s668 = scalar_lea.sflag [#allocation9], 1
    %669 = vsyncpa %s668, 1

</llo_original>
